<compile_context>
chip_gen: v7x
topology: tpu7x:2x2x1
jax: 0.10.0
libtpu: 0.0.40
codegen_flags: <defaults>
</compile_context>

<pallas_src>
import jax
import jax.numpy as jnp
from jax.experimental import pallas as pl
from jax.experimental.pallas import tpu as pltpu

_SUBLANE = 8
_MAX_TILE_ROWS = 1024
_VMEM_BUDGET_BYTES = 48 * 1024 * 1024  # < 64 MiB physical VMEM on v7x


def _round_up(v, m):
    return pl.cdiv(v, m) * m


def classifier_kernel(x_ref, w1_ref, b1_ref, w2_ref, b2_ref, w3_ref, b3_ref, o_ref):
    """Fused 3-layer MLP on one batch tile (all weights resident in VMEM)."""
    x = x_ref[...]                                                     # [TB, H]
    # fc1 + ReLU (f32 accumulate on the MXU)
    h1 = jnp.dot(x, w1_ref[...], preferred_element_type=jnp.float32) + b1_ref[...]
    h1 = jnp.maximum(h1, 0.0)                                          # [TB, H//2]
    # fc2 + ReLU
    h2 = jnp.dot(h1.astype(w2_ref.dtype), w2_ref[...],
                 preferred_element_type=jnp.float32) + b2_ref[...]
    h2 = jnp.maximum(h2, 0.0)                                          # [TB, 10]
    # fc3 (logits, no activation)
    out = jnp.dot(h2.astype(w3_ref.dtype), w3_ref[...],
                  preferred_element_type=jnp.float32) + b3_ref[...]
    o_ref[...] = out.astype(o_ref.dtype)                               # [TB, C]


def _vmem_bytes(tile, H, H2, K2, C, x_itemsize, w_itemsize):
    """Rough VMEM working-set estimate: double-buffered operands + activations."""
    x_b = tile * H * x_itemsize
    out_b = tile * C * 4
    w_b = (H * H2 + H2 * K2 + K2 * C + H2 + K2 + C) * w_itemsize
    act_b = tile * (H2 + K2 + C) * 4
    return 2 * (x_b + out_b + w_b) + act_b + (1 << 20)  # +1 MiB slack


def _choose_batch_tile(B, H, H2, K2, C, x_itemsize, w_itemsize,
                       vmem_budget=_VMEM_BUDGET_BYTES, max_tile=_MAX_TILE_ROWS):
    """Largest sublane-aligned batch tile that fits VMEM; prefer >=2 grid steps
    so the parallel batch axis can shard across v7x's two TensorCores."""
    b_pad = _round_up(max(B, _SUBLANE), _SUBLANE)
    if b_pad >= 2 * _SUBLANE:
        tile = _round_up(pl.cdiv(b_pad, 2), _SUBLANE)  # two-tile split of the batch
    else:
        tile = b_pad
    tile = min(tile, max_tile)
    while tile > _SUBLANE and _vmem_bytes(tile, H, H2, K2, C,
                                          x_itemsize, w_itemsize) > vmem_budget:
        tile = max(_SUBLANE, _round_up(tile // 2, _SUBLANE))
    return int(tile)


def classifier_forward(x, params, *, batch_tile=None, interpret=False):
    """x: [B, hidden_size] -> logits [B, class_num] (f32)."""
    w1, b1, w2, b2, w3, b3 = params
    B, H = x.shape
    H2 = w1.shape[1]
    K2 = w2.shape[1]
    C = w3.shape[1]

    if batch_tile is None:
        batch_tile = _choose_batch_tile(
            B, H, H2, K2, C, x.dtype.itemsize, w1.dtype.itemsize)
    batch_tile = int(_round_up(batch_tile, _SUBLANE))

    # Pad batch to a multiple of the tile so any B works with the
    # roofline-optimal tile (padded rows are dropped below).
    b_pad = int(_round_up(max(B, batch_tile), batch_tile))
    if b_pad != B:
        x = jnp.pad(x, ((0, b_pad - B), (0, 0)))

    grid = (b_pad // batch_tile,)

    # Weights / biases are small: constant index_map keeps them VMEM-resident.
    full = lambda shape: pl.BlockSpec(shape, lambda i: (0, 0))

    out = pl.pallas_call(
        classifier_kernel,
        out_shape=jax.ShapeDtypeStruct((b_pad, C), jnp.float32),
        grid_spec=pltpu.PrefetchScalarGridSpec(
            num_scalar_prefetch=0,
            grid=grid,
            in_specs=[
                pl.BlockSpec((batch_tile, H), lambda i: (i, 0)),   # x tile
                full((H, H2)),                                     # w1
                full((1, H2)),                                     # b1
                full((H2, K2)),                                    # w2
                full((1, K2)),                                     # b2
                full((K2, C)),                                     # w3
                full((1, C)),                                      # b3
            ],
            out_specs=pl.BlockSpec((batch_tile, C), lambda i: (i, 0)),
        ),
        compiler_params=pltpu.CompilerParams(
            dimension_semantics=("parallel",),       # batch axis -> megacore
            vmem_limit_bytes=_VMEM_BUDGET_BYTES,     # explicit scoped VMEM cap
        ),
        interpret=interpret,
    )(x, w1, b1, w2, b2, w3, b3)
    return out[:B]


def init_classifier_params(key, hidden_size, class_num):
    """Deterministic init mimicking PyTorch nn.Linear default (U[-1/sqrt(fan_in), +])."""
    h2 = hidden_size // 2
    dims = [(hidden_size, h2), (h2, 10), (10, class_num)]
    params = []
    for (fan_in, fan_out) in dims:
        key, kw, kb = jax.random.split(key, 3)
        bound = 1.0 / jnp.sqrt(jnp.float32(fan_in))
        w = jax.random.uniform(kw, (fan_in, fan_out), jnp.float32, -bound, bound)
        b = jax.random.uniform(kb, (1, fan_out), jnp.float32, -bound, bound)
        params.extend([w, b])
    return tuple(params)


def classifier_reference(x, params):
    """Pure-JAX reference for correctness check."""
    w1, b1, w2, b2, w3, b3 = params
    h1 = jnp.maximum(x @ w1 + b1, 0.0)
    h2 = jnp.maximum(h1 @ w2 + b2, 0.0)
    return h2 @ w3 + b3


if __name__ == "__main__":
    # config.hidden_size = 32, config.class_num = 4
    HIDDEN_SIZE = 32
    CLASS_NUM = 4

    key = jax.random.PRNGKey(0)
    key, kp = jax.random.split(key)
    params = init_classifier_params(kp, HIDDEN_SIZE, CLASS_NUM)

    # Exercise: even batch (2-step grid), awkward batch (padding path), tiny batch.
    for batch in (64, 37, 8):
        key, kx = jax.random.split(key)
        x = jax.random.normal(kx, (batch, HIDDEN_SIZE), jnp.float32)

        out = jax.block_until_ready(classifier_forward(x, params))
        ref = classifier_reference(x, params)

        assert out.shape == (batch, CLASS_NUM)
        assert jnp.allclose(out, ref, atol=1e-5, rtol=1e-5), f"mismatch at B={batch}"

    print("KERNEL_OK")
</pallas_src>

<mosaic_0001>
module attributes {stable_mosaic.version = 11 : i64} {
  func.func @classifier_kernel(%arg0: i32, %arg1: memref<32x32xf32, #tpu.memory_space<vmem>>, %arg2: memref<32x16xf32, #tpu.memory_space<vmem>>, %arg3: memref<1x16xf32, #tpu.memory_space<vmem>>, %arg4: memref<16x10xf32, #tpu.memory_space<vmem>>, %arg5: memref<1x10xf32, #tpu.memory_space<vmem>>, %arg6: memref<10x4xf32, #tpu.memory_space<vmem>>, %arg7: memref<1x4xf32, #tpu.memory_space<vmem>>, %arg8: memref<32x4xf32, #tpu.memory_space<vmem>>) attributes {dimension_semantics = [#tpu.dimension_semantics<parallel>], iteration_bounds = array<i64: 2>, scalar_prefetch = 0 : i64, scratch_operands = 0 : i64, tpu.core_type = #tpu.core_type<tc>, window_params = [{transform_indices = @transform_0, window_bounds = array<i64: 32, 32>}, {pipeline_mode = #tpu.pipeline_mode<synchronous>, transform_indices = @transform_1, window_bounds = array<i64: 32, 16>}, {pipeline_mode = #tpu.pipeline_mode<synchronous>, transform_indices = @transform_2, window_bounds = array<i64: 1, 16>}, {pipeline_mode = #tpu.pipeline_mode<synchronous>, transform_indices = @transform_3, window_bounds = array<i64: 16, 10>}, {pipeline_mode = #tpu.pipeline_mode<synchronous>, transform_indices = @transform_4, window_bounds = array<i64: 1, 10>}, {pipeline_mode = #tpu.pipeline_mode<synchronous>, transform_indices = @transform_5, window_bounds = array<i64: 10, 4>}, {pipeline_mode = #tpu.pipeline_mode<synchronous>, transform_indices = @transform_6, window_bounds = array<i64: 1, 4>}, {transform_indices = @transform_7, window_bounds = array<i64: 32, 4>}]} {
    %c0 = arith.constant 0 : index
    %c0_0 = arith.constant 0 : index
    %0 = vector.load %arg1[%c0, %c0_0] : memref<32x32xf32, #tpu.memory_space<vmem>>, vector<32x32xf32>
    %c0_1 = arith.constant 0 : index
    %c0_2 = arith.constant 0 : index
    %1 = vector.load %arg2[%c0_1, %c0_2] : memref<32x16xf32, #tpu.memory_space<vmem>>, vector<32x16xf32>
    %cst = arith.constant dense<0.000000e+00> : vector<32x16xf32>
    %2 = tpu.matmul %0, %1, %cst {dimension_numbers = #tpu.dot_dimension_numbers<[1], [0], [0], [1], [0, 0, 1, 1], [], []>} : vector<32x32xf32>, vector<32x16xf32>, vector<32x16xf32> -> vector<32x16xf32>
    %c0_3 = arith.constant 0 : index
    %c0_4 = arith.constant 0 : index
    %3 = vector.load %arg3[%c0_3, %c0_4] : memref<1x16xf32, #tpu.memory_space<vmem>>, vector<1x16xf32>
    %4 = vector.broadcast %3 : vector<1x16xf32> to vector<32x16xf32>
    %5 = arith.addf %2, %4 : vector<32x16xf32>
    %cst_5 = arith.constant 0.000000e+00 : f32
    %6 = vector.broadcast %cst_5 : f32 to vector<32x16xf32>
    %7 = arith.maximumf %5, %6 : vector<32x16xf32>
    %c0_6 = arith.constant 0 : index
    %c0_7 = arith.constant 0 : index
    %8 = vector.load %arg4[%c0_6, %c0_7] : memref<16x10xf32, #tpu.memory_space<vmem>>, vector<16x10xf32>
    %cst_8 = arith.constant dense<0.000000e+00> : vector<32x10xf32>
    %9 = tpu.matmul %7, %8, %cst_8 {dimension_numbers = #tpu.dot_dimension_numbers<[1], [0], [0], [1], [0, 0, 1, 1], [], []>} : vector<32x16xf32>, vector<16x10xf32>, vector<32x10xf32> -> vector<32x10xf32>
    %c0_9 = arith.constant 0 : index
    %c0_10 = arith.constant 0 : index
    %10 = vector.load %arg5[%c0_9, %c0_10] : memref<1x10xf32, #tpu.memory_space<vmem>>, vector<1x10xf32>
    %11 = vector.broadcast %10 : vector<1x10xf32> to vector<32x10xf32>
    %12 = arith.addf %9, %11 : vector<32x10xf32>
    %cst_11 = arith.constant 0.000000e+00 : f32
    %13 = vector.broadcast %cst_11 : f32 to vector<32x10xf32>
    %14 = arith.maximumf %12, %13 : vector<32x10xf32>
    %c0_12 = arith.constant 0 : index
    %c0_13 = arith.constant 0 : index
    %15 = vector.load %arg6[%c0_12, %c0_13] : memref<10x4xf32, #tpu.memory_space<vmem>>, vector<10x4xf32>
    %cst_14 = arith.constant dense<0.000000e+00> : vector<32x4xf32>
    %16 = tpu.matmul %14, %15, %cst_14 {dimension_numbers = #tpu.dot_dimension_numbers<[1], [0], [0], [1], [0, 0, 1, 1], [], []>} : vector<32x10xf32>, vector<10x4xf32>, vector<32x4xf32> -> vector<32x4xf32>
    %c0_15 = arith.constant 0 : index
    %c0_16 = arith.constant 0 : index
    %17 = vector.load %arg7[%c0_15, %c0_16] : memref<1x4xf32, #tpu.memory_space<vmem>>, vector<1x4xf32>
    %18 = vector.broadcast %17 : vector<1x4xf32> to vector<32x4xf32>
    %19 = arith.addf %16, %18 : vector<32x4xf32>
    %c0_17 = arith.constant 0 : index
    %c0_18 = arith.constant 0 : index
    %20 = vector.load %arg8[%c0_17, %c0_18] : memref<32x4xf32, #tpu.memory_space<vmem>>, vector<32x4xf32>
    tpu.vector_store %arg8[%c0_17, %c0_18], %19 {strides = array<i32>} : memref<32x4xf32, #tpu.memory_space<vmem>>, vector<32x4xf32>,
    return
  }
  func.func @transform_0(%arg0: i32) -> (i32, i32) {
    %c0_i32 = arith.constant 0 : i32
    %c0_i32_0 = arith.constant 0 : i32
    return %arg0, %c0_i32 : i32, i32
  }
  func.func @transform_1(%arg0: i32) -> (i32, i32) {
    %c0_i32 = arith.constant 0 : i32
    %c0_i32_0 = arith.constant 0 : i32
    %c0_i32_1 = arith.constant 0 : i32
    return %c0_i32, %c0_i32_0 : i32, i32
  }
  func.func @transform_2(%arg0: i32) -> (i32, i32) {
    %c0_i32 = arith.constant 0 : i32
    %c0_i32_0 = arith.constant 0 : i32
    %c0_i32_1 = arith.constant 0 : i32
    return %c0_i32, %c0_i32_0 : i32, i32
  }
  func.func @transform_3(%arg0: i32) -> (i32, i32) {
    %c0_i32 = arith.constant 0 : i32
    %c0_i32_0 = arith.constant 0 : i32
    %c0_i32_1 = arith.constant 0 : i32
    return %c0_i32, %c0_i32_0 : i32, i32
  }
  func.func @transform_4(%arg0: i32) -> (i32, i32) {
    %c0_i32 = arith.constant 0 : i32
    %c0_i32_0 = arith.constant 0 : i32
    %c0_i32_1 = arith.constant 0 : i32
    return %c0_i32, %c0_i32_0 : i32, i32
  }
  func.func @transform_5(%arg0: i32) -> (i32, i32) {
    %c0_i32 = arith.constant 0 : i32
    %c0_i32_0 = arith.constant 0 : i32
    %c0_i32_1 = arith.constant 0 : i32
    return %c0_i32, %c0_i32_0 : i32, i32
  }
  func.func @transform_6(%arg0: i32) -> (i32, i32) {
    %c0_i32 = arith.constant 0 : i32
    %c0_i32_0 = arith.constant 0 : i32
    %c0_i32_1 = arith.constant 0 : i32
    return %c0_i32, %c0_i32_0 : i32, i32
  }
  func.func @transform_7(%arg0: i32) -> (i32, i32) {
    %c0_i32 = arith.constant 0 : i32
    %c0_i32_0 = arith.constant 0 : i32
    return %arg0, %c0_i32 : i32, i32
  }
}

</mosaic_0001>

<llo_original>
// kernel: tpu_custom_call.1
$region0: #{tpu_custom_call.1}
  #allocation0 [shape = 'u32[]', space=smem, size = 0x4, offset = 0x4, fixed_abs, tag = 'smem constant byte address 0x4 - core index']
  #allocation1 [shape = 'u32[144,128]{1,0:T(1,128)}', space=vmem, size = 0x12000, scoped, tag = 'internal scratch']
  %s0 = inlined_call_operand.vmem [shape: f32[64,32], index: 0, kind: input, shape index: {}]
  %s1 = inlined_call_operand.vmem [shape: f32[32,16], index: 1, kind: input, shape index: {}]
  %s2 = inlined_call_operand.vmem [shape: f32[1,16], index: 2, kind: input, shape index: {}]
  %s3 = inlined_call_operand.vmem [shape: f32[16,10], index: 3, kind: input, shape index: {}]
  %s4 = inlined_call_operand.vmem [shape: f32[1,10], index: 4, kind: input, shape index: {}]
  %s5 = inlined_call_operand.vmem [shape: f32[10,4], index: 5, kind: input, shape index: {}]
  %s6 = inlined_call_operand.vmem [shape: f32[1,4], index: 6, kind: input, shape index: {}]
  %s7 = inlined_call_operand.vmem [shape: f32[64,4], index: 7, kind: output, shape index: {}]
  %s8 = sld [smem:[#allocation0]]
  $region61: #{tpu_custom_call.1} parent=0
    _
  %s10 = ssub.s32 1, %s8
  %s11 = scalar_select 0, %s10, %s8
  loop: start=0, step=1, limit=4
  $region2: #{tpu_custom_call.1} parent=0 // loop_pre_header
    _
  $region3: #{tpu_custom_call.1} parent=0 // loop_header
    %s13 = sphi 0, %s17
    %p14 = scmp.ge.s32.totalorder %s13, 4
    %s23 = sphi 0, %s25
    %s26 = sphi 0, %s23
    %s27 = sphi 0, %s26
    %s43 = sphi 0, %s27
    %s47 = sphi 0, %s47
    %s49 = sphi 0, %s47
    %s50 = sphi 0, %s49
    %s64 = sphi 0, %s50
    %s68 = sphi 0, %s68
    %s70 = sphi 0, %s68
    %s71 = sphi 0, %s70
    %s85 = sphi 0, %s71
    %s89 = sphi 0, %s89
    %s91 = sphi 0, %s89
    %s92 = sphi 0, %s91
    %s106 = sphi 0, %s92
    %s110 = sphi 0, %s110
    %s112 = sphi 0, %s110
    %s113 = sphi 0, %s112
    %s127 = sphi 0, %s113
    %s131 = sphi 0, %s131
    %s133 = sphi 0, %s131
    %s134 = sphi 0, %s133
    %s148 = sphi 0, %s134
    %s152 = sphi 0, %s152
    %s154 = sphi 0, %s152
    %s155 = sphi 0, %s154
    %s169 = sphi 0, %s155
    %s175 = sphi 0, %s177
    %s178 = sphi 0, %s175
    %s179 = sphi 0, %s178
    %s195 = sphi 0, %s179
  $region4: #{tpu_custom_call.1} parent=0 // loop_header_branch
    %16 = sbr.rel (%p14) target = $region8
  $region5: #{tpu_custom_call.1} parent=0 // loop_body
    %s18 = ssub.s32 %s13, 1
    %s19 = ssub.s32 %s13, 2
    %s20 = sadd.s32 %s13, 1
    %s21 = ssub.s32 %s13, %s20
    %p22 = scmp.eq.s32.totalorder %s21, 0
    %s24 = sadd.s32 %s23, 1
    %s25 = scalar_select %p22, %s23, %s24
    %p28 = pneg %p22
    %p29 = scmp.eq.s32.totalorder %s13, 1
    %p30 = por %p28, %p29
    %p31 = scmp.ne.s32.totalorder %s23, %s26
    %p32 = scmp.eq.s32.totalorder %s13, 0
    %p33 = por %p31, %p32
    %p34 = scmp.ne.s32.totalorder %s23, %s26
    %p35 = scmp.eq.s32.totalorder %s18, 1
    %p36 = por %p34, %p35
    %p37 = scmp.ne.s32.totalorder %s26, %s27
    %p38 = scmp.eq.s32.totalorder %s18, 0
    %p39 = por %p37, %p38
    %p40 = scmp.ne.s32.totalorder %s26, %s27
    %p41 = scmp.eq.s32.totalorder %s19, 1
    %p42 = por %p40, %p41
    %p44 = scmp.ne.s32.totalorder %s27, %s43
    %p45 = scmp.eq.s32.totalorder %s19, 0
    %p46 = por %p44, %p45
    %s48 = sadd.s32 %s47, 1
    %p51 = scmp.eq.s32.totalorder %s13, 1
    %p52 = scmp.ne.s32.totalorder %s47, %s49
    %p53 = scmp.eq.s32.totalorder %s13, 0
    %p54 = por %p52, %p53
    %p55 = scmp.ne.s32.totalorder %s47, %s49
    %p56 = scmp.eq.s32.totalorder %s18, 1
    %p57 = por %p55, %p56
    %p58 = scmp.ne.s32.totalorder %s49, %s50
    %p59 = scmp.eq.s32.totalorder %s18, 0
    %p60 = por %p58, %p59
    %p61 = scmp.ne.s32.totalorder %s49, %s50
    %p62 = scmp.eq.s32.totalorder %s19, 1
    %p63 = por %p61, %p62
    %p65 = scmp.ne.s32.totalorder %s50, %s64
    %p66 = scmp.eq.s32.totalorder %s19, 0
    %p67 = por %p65, %p66
    %s69 = sadd.s32 %s68, 1
    %p72 = scmp.eq.s32.totalorder %s13, 1
    %p73 = scmp.ne.s32.totalorder %s68, %s70
    %p74 = scmp.eq.s32.totalorder %s13, 0
    %p75 = por %p73, %p74
    %p76 = scmp.ne.s32.totalorder %s68, %s70
    %p77 = scmp.eq.s32.totalorder %s18, 1
    %p78 = por %p76, %p77
    %p79 = scmp.ne.s32.totalorder %s70, %s71
    %p80 = scmp.eq.s32.totalorder %s18, 0
    %p81 = por %p79, %p80
    %p82 = scmp.ne.s32.totalorder %s70, %s71
    %p83 = scmp.eq.s32.totalorder %s19, 1
    %p84 = por %p82, %p83
    %p86 = scmp.ne.s32.totalorder %s71, %s85
    %p87 = scmp.eq.s32.totalorder %s19, 0
    %p88 = por %p86, %p87
    %s90 = sadd.s32 %s89, 1
    %p93 = scmp.eq.s32.totalorder %s13, 1
    %p94 = scmp.ne.s32.totalorder %s89, %s91
    %p95 = scmp.eq.s32.totalorder %s13, 0
    %p96 = por %p94, %p95
    %p97 = scmp.ne.s32.totalorder %s89, %s91
    %p98 = scmp.eq.s32.totalorder %s18, 1
    %p99 = por %p97, %p98
    %p100 = scmp.ne.s32.totalorder %s91, %s92
    %p101 = scmp.eq.s32.totalorder %s18, 0
    %p102 = por %p100, %p101
    %p103 = scmp.ne.s32.totalorder %s91, %s92
    %p104 = scmp.eq.s32.totalorder %s19, 1
    %p105 = por %p103, %p104
    %p107 = scmp.ne.s32.totalorder %s92, %s106
    %p108 = scmp.eq.s32.totalorder %s19, 0
    %p109 = por %p107, %p108
    %s111 = sadd.s32 %s110, 1
    %p114 = scmp.eq.s32.totalorder %s13, 1
    %p115 = scmp.ne.s32.totalorder %s110, %s112
    %p116 = scmp.eq.s32.totalorder %s13, 0
    %p117 = por %p115, %p116
    %p118 = scmp.ne.s32.totalorder %s110, %s112
    %p119 = scmp.eq.s32.totalorder %s18, 1
    %p120 = por %p118, %p119
    %p121 = scmp.ne.s32.totalorder %s112, %s113
    %p122 = scmp.eq.s32.totalorder %s18, 0
    %p123 = por %p121, %p122
    %p124 = scmp.ne.s32.totalorder %s112, %s113
    %p125 = scmp.eq.s32.totalorder %s19, 1
    %p126 = por %p124, %p125
    %p128 = scmp.ne.s32.totalorder %s113, %s127
    %p129 = scmp.eq.s32.totalorder %s19, 0
    %p130 = por %p128, %p129
    %s132 = sadd.s32 %s131, 1
    %p135 = scmp.eq.s32.totalorder %s13, 1
    %p136 = scmp.ne.s32.totalorder %s131, %s133
    %p137 = scmp.eq.s32.totalorder %s13, 0
    %p138 = por %p136, %p137
    %p139 = scmp.ne.s32.totalorder %s131, %s133
    %p140 = scmp.eq.s32.totalorder %s18, 1
    %p141 = por %p139, %p140
    %p142 = scmp.ne.s32.totalorder %s133, %s134
    %p143 = scmp.eq.s32.totalorder %s18, 0
    %p144 = por %p142, %p143
    %p145 = scmp.ne.s32.totalorder %s133, %s134
    %p146 = scmp.eq.s32.totalorder %s19, 1
    %p147 = por %p145, %p146
    %p149 = scmp.ne.s32.totalorder %s134, %s148
    %p150 = scmp.eq.s32.totalorder %s19, 0
    %p151 = por %p149, %p150
    %s153 = sadd.s32 %s152, 1
    %p156 = scmp.eq.s32.totalorder %s13, 1
    %p157 = scmp.ne.s32.totalorder %s152, %s154
    %p158 = scmp.eq.s32.totalorder %s13, 0
    %p159 = por %p157, %p158
    %p160 = scmp.ne.s32.totalorder %s152, %s154
    %p161 = scmp.eq.s32.totalorder %s18, 1
    %p162 = por %p160, %p161
    %p163 = scmp.ne.s32.totalorder %s154, %s155
    %p164 = scmp.eq.s32.totalorder %s18, 0
    %p165 = por %p163, %p164
    %p166 = scmp.ne.s32.totalorder %s154, %s155
    %p167 = scmp.eq.s32.totalorder %s19, 1
    %p168 = por %p166, %p167
    %p170 = scmp.ne.s32.totalorder %s155, %s169
    %p171 = scmp.eq.s32.totalorder %s19, 0
    %p172 = por %p170, %p171
    %s173 = ssub.s32 %s13, %s20
    %p174 = scmp.eq.s32.totalorder %s173, 0
    %s176 = sadd.s32 %s175, 1
    %s177 = scalar_select %p174, %s175, %s176
    %p180 = pneg %p174
    %p181 = scmp.eq.s32.totalorder %s13, 1
    %p182 = por %p180, %p181
    %p183 = scmp.ne.s32.totalorder %s175, %s178
    %p184 = scmp.eq.s32.totalorder %s13, 0
    %p185 = por %p183, %p184
    %p186 = scmp.ne.s32.totalorder %s175, %s178
    %p187 = scmp.eq.s32.totalorder %s18, 1
    %p188 = por %p186, %p187
    %p189 = scmp.ne.s32.totalorder %s178, %s179
    %p190 = scmp.eq.s32.totalorder %s18, 0
    %p191 = por %p189, %p190
    %p192 = scmp.ne.s32.totalorder %s178, %s179
    %p193 = scmp.eq.s32.totalorder %s19, 1
    %p194 = por %p192, %p193
    %p196 = scmp.ne.s32.totalorder %s179, %s195
    %p197 = scmp.eq.s32.totalorder %s19, 0
    %p198 = por %p196, %p197
    %p199 = scmp.le.s32.totalorder 1, %s13
    %p200 = scmp.lt.s32.totalorder %s13, 3
    %p201 = pnand %p199, %p200
    %p202 = pneg %p201
    // Predicated region
    $region9: #{tpu_custom_call.1} parent=5 // pred_check
      _
    $region10: #{tpu_custom_call.1} parent=5 // pred_check_branch
      %204 = sbr.rel (%p201) target = $region12
    $region11: #{tpu_custom_call.1} parent=5 // pred_region
      %s205 = ssub.s32 %s13, 1
      // Predicated region
      $region13: #{tpu_custom_call.1} parent=11 // pred_check
        %p206 = pneg %p60
      $region14: #{tpu_custom_call.1} parent=11 // pred_check_branch
        %208 = sbr.rel (%p206) target = $region16
      $region15: #{tpu_custom_call.1} parent=11 // pred_region
        _
      $region16: #{tpu_custom_call.1} parent=11 // pred_fallthru
        _
      // Predicated region
      $region17: #{tpu_custom_call.1} parent=11 // pred_check
        %p209 = pneg %p81
      $region18: #{tpu_custom_call.1} parent=11 // pred_check_branch
        %211 = sbr.rel (%p209) target = $region20
      $region19: #{tpu_custom_call.1} parent=11 // pred_region
        _
      $region20: #{tpu_custom_call.1} parent=11 // pred_fallthru
        _
      // Predicated region
      $region21: #{tpu_custom_call.1} parent=11 // pred_check
        %p212 = pneg %p102
      $region22: #{tpu_custom_call.1} parent=11 // pred_check_branch
        %214 = sbr.rel (%p212) target = $region24
      $region23: #{tpu_custom_call.1} parent=11 // pred_region
        _
      $region24: #{tpu_custom_call.1} parent=11 // pred_fallthru
        _
      // Predicated region
      $region25: #{tpu_custom_call.1} parent=11 // pred_check
        %p215 = pneg %p123
      $region26: #{tpu_custom_call.1} parent=11 // pred_check_branch
        %217 = sbr.rel (%p215) target = $region28
      $region27: #{tpu_custom_call.1} parent=11 // pred_region
        _
      $region28: #{tpu_custom_call.1} parent=11 // pred_fallthru
        _
      // Predicated region
      $region29: #{tpu_custom_call.1} parent=11 // pred_check
        %p218 = pneg %p144
      $region30: #{tpu_custom_call.1} parent=11 // pred_check_branch
        %220 = sbr.rel (%p218) target = $region32
      $region31: #{tpu_custom_call.1} parent=11 // pred_region
        _
      $region32: #{tpu_custom_call.1} parent=11 // pred_fallthru
        _
      // Predicated region
      $region33: #{tpu_custom_call.1} parent=11 // pred_check
        %p221 = pneg %p165
      $region34: #{tpu_custom_call.1} parent=11 // pred_check_branch
        %223 = sbr.rel (%p221) target = $region36
      $region35: #{tpu_custom_call.1} parent=11 // pred_region
        _
      $region36: #{tpu_custom_call.1} parent=11 // pred_fallthru
        _
    $region12: #{tpu_custom_call.1} parent=5 // pred_fallthru
      _
    %p224 = scmp.lt.s32.totalorder %s13, 2
    // Predicated region
    $region37: #{tpu_custom_call.1} parent=5 // pred_check
      %p225 = pneg %p224
    $region38: #{tpu_custom_call.1} parent=5 // pred_check_branch
      %227 = sbr.rel (%p225) target = $region40
    $region39: #{tpu_custom_call.1} parent=5 // pred_region
      // Predicated region
      $region41: #{tpu_custom_call.1} parent=39 // pred_check
        %p228 = pneg %p33
      $region42: #{tpu_custom_call.1} parent=39 // pred_check_branch
        %230 = sbr.rel (%p228) target = $region44
      $region43: #{tpu_custom_call.1} parent=39 // pred_region
        %s231 = smul.u32 4, %s13
        %p232 = scmp.lt.s32.totalorder %s231, 7
        %s233 = scalar_select %p232, %s231, 7
        %s234 = smul.addr %s233, 8
        %s235 = scalar_lea.vmem %s0, %s234
        %s236 = smul.u32 4, %s13
      $region44: #{tpu_custom_call.1} parent=39 // pred_fallthru
        _
    $region40: #{tpu_custom_call.1} parent=5 // pred_fallthru
      _
    %p237 = scmp.le.s32.totalorder 1, %s13
    %p238 = scmp.lt.s32.totalorder %s13, 3
    %p239 = pnand %p237, %p238
    %p240 = pneg %p239
    // Predicated region
    $region45: #{tpu_custom_call.1} parent=5 // pred_check
      _
    $region46: #{tpu_custom_call.1} parent=5 // pred_check_branch
      %242 = sbr.rel (%p239) target = $region48
    $region47: #{tpu_custom_call.1} parent=5 // pred_region
      %s243 = ssub.s32 %s13, 1
      %s244 = smul.u32 4, %s18
      %p245 = scmp.lt.s32.totalorder %s244, 7
      %s246 = scalar_select %p245, %s244, 7
      %s247 = smul.addr %s246, 8
      %s248 = scalar_lea.vmem %s0, %s247
      %p249 = pneg %p39
      %p250 = pneg %p36
      %p251 = pneg %p60
      %p252 = pneg %p57
      %p253 = pneg %p81
      %p254 = pneg %p78
      %p255 = pneg %p102
      %p256 = pneg %p99
      %p257 = pneg %p123
      %p258 = pneg %p120
      %p259 = pneg %p144
      %p260 = pneg %p141
      %p261 = pneg %p165
      %p262 = pneg %p162
      %p263 = pneg %p191
      %p264 = pneg %p188
      %s265 = smul.u32 4, %s18
      %p266 = scmp.lt.s32.totalorder %s265, 7
      %s267 = scalar_select %p266, %s265, 7
      %s268 = smul.addr %s267, 8
      %s269 = scalar_lea.vmem %s7, %s268
      %s270 = smul.u32 4, %s18
      %p271 = scmp.lt.s32.totalorder %s270, 7
      %s272 = scalar_select %p271, %s270, 7
      %s273 = smul.addr %s272, 8
      %s274 = scalar_lea.vmem %s0, %s273
      %s275 = smul.u32 4, %s18
      %s276 = smul.u32 4, %s18
      %p277 = scmp.lt.s32.totalorder %s276, 7
      %s278 = scalar_select %p277, %s276, 7
      %s279 = smul.addr %s278, 8
      %s280 = scalar_lea.vmem %s7, %s279
      %s281 = smul.u32 4, %s18
      %v282 = vld [vmem:[%s274] sm:$0xff]
      %v283 = vld [vmem:[%s274 + $0x8] sm:$0xff]
      %v284 = vld [vmem:[%s274 + $0x10] sm:$0xff]
      %v285 = vld [vmem:[%s274 + $0x18] sm:$0xff]
      %v286 = vld [vmem:[%s1] sm:$0xff]
      %v287 = vld [vmem:[%s1 + $0x8] sm:$0xff]
      %v288 = vld [vmem:[%s1 + $0x10] sm:$0xff]
      %v289 = vld [vmem:[%s1 + $0x18] sm:$0xff]
      %v290 = vld [vmem:[%s2] sm:$0x1]
      %v292 = vlaneseq
      %v293 = vshrl.u32 %v292, 7
      %v294 = vsub.s32 0, %v293
      %v295 = vrot.slane %v290, %v294
      %vm297 = vcmask 261120
      %v299 = vsel %vm297, %v282, 0
      %v302 = vsel %vm297, %v283, 0
      %v305 = vsel %vm297, %v284, 0
      %v308 = vsel %vm297, %v285, 0
      %310 = vmatprep.subr.mxu0 0.0
      %311 = vmatpush1.msra.mxu0 %v286
      %312 = vmatprep.subr.mxu0 0.0
      %313 = vmatpush1.msra.mxu0 %v287
      %314 = vmatprep.subr.mxu0 0.0
      %315 = vmatpush1.msra.mxu0 %v288
      %316 = vmatprep.subr.mxu0 0.0
      %317 = vmatpush1.msra.mxu0 %v289
      %318 = vmatprep.subr.mxu0 0.0
      %319 = vmatpush1.msra.mxu0 0.0
      %320 = vmatprep.subr.mxu0 0.0
      %321 = vmatpush1.msra.mxu0 0.0
      %322 = vmatprep.subr.mxu0 0.0
      %323 = vmatpush1.msra.mxu0 0.0
      %324 = vmatprep.subr.mxu0 0.0
      %325 = vmatpush1.msra.mxu0 0.0
      %326 = vmatprep.subr.mxu0 0.0
      %327 = vmatpush1.msra.mxu0 0.0
      %328 = vmatprep.subr.mxu0 0.0
      %329 = vmatpush1.msra.mxu0 0.0
      %330 = vmatprep.subr.mxu0 0.0
      %331 = vmatpush1.msra.mxu0 0.0
      %332 = vmatprep.subr.mxu0 0.0
      %333 = vmatpush1.msra.mxu0 0.0
      %334 = vmatprep.subr.mxu0 0.0
      %335 = vmatpush1.msra.mxu0 0.0
      %336 = vmatprep.subr.mxu0 0.0
      %337 = vmatpush1.msra.mxu0 0.0
      %338 = vmatprep.subr.mxu0 0.0
      %339 = vmatpush1.msra.mxu0 0.0
      %340 = vmatprep.subr.mxu0 0.0
      %341 = vmatpush1.msra.mxu0 0.0
      %342 = vmatprep.subr.mxu0 0.0
      %343 = vmatpush1.msra.mxu0 0.0
      %344 = vmatprep.subr.mxu0 0.0
      %345 = vmatpush1.msra.mxu0 0.0
      %346 = vmatprep.subr.mxu0 0.0
      %347 = vmatpush1.msra.mxu0 0.0
      %348 = vmatprep.subr.mxu0 0.0
      %349 = vmatpush1.msra.mxu0 0.0
      %350 = vmatprep.subr.mxu0 0.0
      %351 = vmatpush1.msra.mxu0 0.0
      %352 = vmatprep.subr.mxu0 0.0
      %353 = vmatpush1.msra.mxu0 0.0
      %354 = vmatprep.subr.mxu0 0.0
      %355 = vmatpush1.msra.mxu0 0.0
      %356 = vmatprep.subr.mxu0 0.0
      %357 = vmatpush1.msra.mxu0 0.0
      %358 = vmatprep.subr.mxu0 0.0
      %359 = vmatpush1.msra.mxu0 0.0
      %360 = vmatprep.subr.mxu0 0.0
      %361 = vmatpush1.msra.mxu0 0.0
      %362 = vmatprep.subr.mxu0 0.0
      %363 = vmatpush1.msra.mxu0 0.0
      %364 = vmatprep.subr.mxu0 0.0
      %365 = vmatpush1.msra.mxu0 0.0
      %366 = vmatprep.subr.mxu0 0.0
      %367 = vmatpush1.msra.mxu0 0.0
      %368 = vmatprep.subr.mxu0 0.0
      %369 = vmatpush1.msra.mxu0 0.0
      %370 = vmatprep.subr.mxu0 0.0
      %371 = vmatpush1.msra.mxu0 0.0
      %372 = vmatprep.subr.mxu0 0.0
      %373 = vmatpush1.msra.mxu0 0.0
      %374 = vmatprep.mubr.f32.mxu0 0.0
      %375 = vmatmul.mubr.f32.gmra.mrb[0].mxu0 %v299
      %v376 = vpop.f32.mrb[0].mxu0
      %v377 = vadd.f32 %v295, %v376
      %v378 = vpop.f32.mrb[0].mxu0
      %379 = vmatprep.mubr.f32.mxu0 0.0
      %380 = vmatmul.mubr.f32.gmra.mrb[0].mxu0 %v302
      %v381 = vpop.f32.mrb[0].mxu0
      %v382 = vadd.f32 %v295, %v381
      %v383 = vpop.f32.mrb[0].mxu0
      %384 = vmatprep.mubr.f32.mxu0 0.0
      %385 = vmatmul.mubr.f32.gmra.mrb[0].mxu0 %v305
      %v386 = vpop.f32.mrb[0].mxu0
      %v387 = vadd.f32 %v295, %v386
      %v388 = vpop.f32.mrb[0].mxu0
      %389 = vmatprep.mubr.f32.mxu0 0.0
      %390 = vmatmul.mubr.f32.gmra.mrb[0].mxu0 %v308
      %v391 = vpop.f32.mrb[0].mxu0
      %v392 = vadd.f32 %v295, %v391
      %v393 = vpop.f32.mrb[0].mxu0
      %394 = vdwg.mxu0
      %v395 = vmax.f32 %v377, 0.0
      %v396 = vmax.f32 %v382, 0.0
      %v397 = vmax.f32 %v387, 0.0
      %v398 = vmax.f32 %v392, 0.0
      %v399 = vld [vmem:[%s3] sm:$0xff]
      %v400 = vld [vmem:[%s3 + $0x8] sm:$0xff]
      %v401 = vld [vmem:[%s4] sm:$0x1]
      %v403 = vlaneseq
      %v404 = vshrl.u32 %v403, 7
      %v405 = vsub.s32 0, %v404
      %v406 = vrot.slane %v401, %v405
      %vm408 = vcmask 130048
      %v410 = vsel %vm408, %v395, 0
      %v413 = vsel %vm408, %v396, 0
      %v416 = vsel %vm408, %v397, 0
      %v419 = vsel %vm408, %v398, 0
      %421 = vmatprep.subr.mxu0 0.0
      %422 = vmatpush1.msra.mxu0 %v399
      %423 = vmatprep.subr.mxu0 0.0
      %424 = vmatpush1.msra.mxu0 %v400
      %425 = vmatprep.subr.mxu0 0.0
      %426 = vmatpush1.msra.mxu0 0.0
      %427 = vmatprep.subr.mxu0 0.0
      %428 = vmatpush1.msra.mxu0 0.0
      %429 = vmatprep.subr.mxu0 0.0
      %430 = vmatpush1.msra.mxu0 0.0
      %431 = vmatprep.subr.mxu0 0.0
      %432 = vmatpush1.msra.mxu0 0.0
      %433 = vmatprep.subr.mxu0 0.0
      %434 = vmatpush1.msra.mxu0 0.0
      %435 = vmatprep.subr.mxu0 0.0
      %436 = vmatpush1.msra.mxu0 0.0
      %437 = vmatprep.subr.mxu0 0.0
      %438 = vmatpush1.msra.mxu0 0.0
      %439 = vmatprep.subr.mxu0 0.0
      %440 = vmatpush1.msra.mxu0 0.0
      %441 = vmatprep.subr.mxu0 0.0
      %442 = vmatpush1.msra.mxu0 0.0
      %443 = vmatprep.subr.mxu0 0.0
      %444 = vmatpush1.msra.mxu0 0.0
      %445 = vmatprep.subr.mxu0 0.0
      %446 = vmatpush1.msra.mxu0 0.0
      %447 = vmatprep.subr.mxu0 0.0
      %448 = vmatpush1.msra.mxu0 0.0
      %449 = vmatprep.subr.mxu0 0.0
      %450 = vmatpush1.msra.mxu0 0.0
      %451 = vmatprep.subr.mxu0 0.0
      %452 = vmatpush1.msra.mxu0 0.0
      %453 = vmatprep.subr.mxu0 0.0
      %454 = vmatpush1.msra.mxu0 0.0
      %455 = vmatprep.subr.mxu0 0.0
      %456 = vmatpush1.msra.mxu0 0.0
      %457 = vmatprep.subr.mxu0 0.0
      %458 = vmatpush1.msra.mxu0 0.0
      %459 = vmatprep.subr.mxu0 0.0
      %460 = vmatpush1.msra.mxu0 0.0
      %461 = vmatprep.subr.mxu0 0.0
      %462 = vmatpush1.msra.mxu0 0.0
      %463 = vmatprep.subr.mxu0 0.0
      %464 = vmatpush1.msra.mxu0 0.0
      %465 = vmatprep.subr.mxu0 0.0
      %466 = vmatpush1.msra.mxu0 0.0
      %467 = vmatprep.subr.mxu0 0.0
      %468 = vmatpush1.msra.mxu0 0.0
      %469 = vmatprep.subr.mxu0 0.0
      %470 = vmatpush1.msra.mxu0 0.0
      %471 = vmatprep.subr.mxu0 0.0
      %472 = vmatpush1.msra.mxu0 0.0
      %473 = vmatprep.subr.mxu0 0.0
      %474 = vmatpush1.msra.mxu0 0.0
      %475 = vmatprep.subr.mxu0 0.0
      %476 = vmatpush1.msra.mxu0 0.0
      %477 = vmatprep.subr.mxu0 0.0
      %478 = vmatpush1.msra.mxu0 0.0
      %479 = vmatprep.subr.mxu0 0.0
      %480 = vmatpush1.msra.mxu0 0.0
      %481 = vmatprep.subr.mxu0 0.0
      %482 = vmatpush1.msra.mxu0 0.0
      %483 = vmatprep.subr.mxu0 0.0
      %484 = vmatpush1.msra.mxu0 0.0
      %485 = vmatprep.mubr.f32.mxu0 0.0
      %486 = vmatmul.mubr.f32.gmra.mrb[0].mxu0 %v410
      %v487 = vpop.f32.mrb[0].mxu0
      %v488 = vadd.f32 %v406, %v487
      %v489 = vpop.f32.mrb[0].mxu0
      %490 = vmatprep.mubr.f32.mxu0 0.0
      %491 = vmatmul.mubr.f32.gmra.mrb[0].mxu0 %v413
      %v492 = vpop.f32.mrb[0].mxu0
      %v493 = vadd.f32 %v406, %v492
      %v494 = vpop.f32.mrb[0].mxu0
      %495 = vmatprep.mubr.f32.mxu0 0.0
      %496 = vmatmul.mubr.f32.gmra.mrb[0].mxu0 %v416
      %v497 = vpop.f32.mrb[0].mxu0
      %v498 = vadd.f32 %v406, %v497
      %v499 = vpop.f32.mrb[0].mxu0
      %500 = vmatprep.mubr.f32.mxu0 0.0
      %501 = vmatmul.mubr.f32.gmra.mrb[0].mxu0 %v419
      %v502 = vpop.f32.mrb[0].mxu0
      %v503 = vadd.f32 %v406, %v502
      %v504 = vpop.f32.mrb[0].mxu0
      %505 = vdwg.mxu0
      %v506 = vmax.f32 %v488, 0.0
      %v507 = vmax.f32 %v493, 0.0
      %v508 = vmax.f32 %v498, 0.0
      %v509 = vmax.f32 %v503, 0.0
      %v510 = vld [vmem:[%s5] sm:$0xff]
      %v511 = vld [vmem:[%s5 + $0x8] sm:$0x3]
      %v512 = vld [vmem:[%s6] sm:$0x1]
      %v514 = vlaneseq
      %v515 = vshrl.u32 %v514, 7
      %v516 = vsub.s32 0, %v515
      %v517 = vrot.slane %v512, %v516
      %vm519 = vcmask 80896
      %v521 = vsel %vm519, %v506, 0
      %v524 = vsel %vm519, %v507, 0
      %v527 = vsel %vm519, %v508, 0
      %v530 = vsel %vm519, %v509, 0
      %vm532 = vcmask 1041408
      %v534 = vsel %vm532, %v511, 0
      %536 = vmatprep.subr.mxu0 0.0
      %537 = vmatpush1.msra.mxu0 %v510
      %538 = vmatprep.subr.mxu0 0.0
      %539 = vmatpush1.msra.mxu0 %v534
      %540 = vmatprep.subr.mxu0 0.0
      %541 = vmatpush1.msra.mxu0 0.0
      %542 = vmatprep.subr.mxu0 0.0
      %543 = vmatpush1.msra.mxu0 0.0
      %544 = vmatprep.subr.mxu0 0.0
      %545 = vmatpush1.msra.mxu0 0.0
      %546 = vmatprep.subr.mxu0 0.0
      %547 = vmatpush1.msra.mxu0 0.0
      %548 = vmatprep.subr.mxu0 0.0
      %549 = vmatpush1.msra.mxu0 0.0
      %550 = vmatprep.subr.mxu0 0.0
      %551 = vmatpush1.msra.mxu0 0.0
      %552 = vmatprep.subr.mxu0 0.0
      %553 = vmatpush1.msra.mxu0 0.0
      %554 = vmatprep.subr.mxu0 0.0
      %555 = vmatpush1.msra.mxu0 0.0
      %556 = vmatprep.subr.mxu0 0.0
      %557 = vmatpush1.msra.mxu0 0.0
      %558 = vmatprep.subr.mxu0 0.0
      %559 = vmatpush1.msra.mxu0 0.0
      %560 = vmatprep.subr.mxu0 0.0
      %561 = vmatpush1.msra.mxu0 0.0
      %562 = vmatprep.subr.mxu0 0.0
      %563 = vmatpush1.msra.mxu0 0.0
      %564 = vmatprep.subr.mxu0 0.0
      %565 = vmatpush1.msra.mxu0 0.0
      %566 = vmatprep.subr.mxu0 0.0
      %567 = vmatpush1.msra.mxu0 0.0
      %568 = vmatprep.subr.mxu0 0.0
      %569 = vmatpush1.msra.mxu0 0.0
      %570 = vmatprep.subr.mxu0 0.0
      %571 = vmatpush1.msra.mxu0 0.0
      %572 = vmatprep.subr.mxu0 0.0
      %573 = vmatpush1.msra.mxu0 0.0
      %574 = vmatprep.subr.mxu0 0.0
      %575 = vmatpush1.msra.mxu0 0.0
      %576 = vmatprep.subr.mxu0 0.0
      %577 = vmatpush1.msra.mxu0 0.0
      %578 = vmatprep.subr.mxu0 0.0
      %579 = vmatpush1.msra.mxu0 0.0
      %580 = vmatprep.subr.mxu0 0.0
      %581 = vmatpush1.msra.mxu0 0.0
      %582 = vmatprep.subr.mxu0 0.0
      %583 = vmatpush1.msra.mxu0 0.0
      %584 = vmatprep.subr.mxu0 0.0
      %585 = vmatpush1.msra.mxu0 0.0
      %586 = vmatprep.subr.mxu0 0.0
      %587 = vmatpush1.msra.mxu0 0.0
      %588 = vmatprep.subr.mxu0 0.0
      %589 = vmatpush1.msra.mxu0 0.0
      %590 = vmatprep.subr.mxu0 0.0
      %591 = vmatpush1.msra.mxu0 0.0
      %592 = vmatprep.subr.mxu0 0.0
      %593 = vmatpush1.msra.mxu0 0.0
      %594 = vmatprep.subr.mxu0 0.0
      %595 = vmatpush1.msra.mxu0 0.0
      %596 = vmatprep.subr.mxu0 0.0
      %597 = vmatpush1.msra.mxu0 0.0
      %598 = vmatprep.subr.mxu0 0.0
      %599 = vmatpush1.msra.mxu0 0.0
      %600 = vmatprep.mubr.f32.mxu0 0.0
      %601 = vmatmul.mubr.f32.gmra.mrb[0].mxu0 %v521
      %v602 = vpop.f32.mrb[0].mxu0
      %v603 = vadd.f32 %v517, %v602
      %v604 = vpop.f32.mrb[0].mxu0
      %605 = vmatprep.mubr.f32.mxu0 0.0
      %606 = vmatmul.mubr.f32.gmra.mrb[0].mxu0 %v524
      %v607 = vpop.f32.mrb[0].mxu0
      %v608 = vadd.f32 %v517, %v607
      %v609 = vpop.f32.mrb[0].mxu0
      %610 = vmatprep.mubr.f32.mxu0 0.0
      %611 = vmatmul.mubr.f32.gmra.mrb[0].mxu0 %v527
      %v612 = vpop.f32.mrb[0].mxu0
      %v613 = vadd.f32 %v517, %v612
      %v614 = vpop.f32.mrb[0].mxu0
      %615 = vmatprep.mubr.f32.mxu0 0.0
      %616 = vmatmul.mubr.f32.gmra.mrb[0].mxu0 %v530
      %v617 = vpop.f32.mrb[0].mxu0
      %v618 = vadd.f32 %v517, %v617
      %v619 = vpop.f32.mrb[0].mxu0
      %620 = vdwg.mxu0
      %vm621 = vcmask 31744
      %622 = vst.msk [vmem:[%s280] sm:$0xff] %vm621, %v603
      %623 = vst.msk [vmem:[%s280 + $0x8] sm:$0xff] %vm621, %v608
      %624 = vst.msk [vmem:[%s280 + $0x10] sm:$0xff] %vm621, %v613
      %625 = vst.msk [vmem:[%s280 + $0x18] sm:$0xff] %vm621, %v618
      %s626 = smul.u32 4, %s18
      %p627 = scmp.lt.s32.totalorder %s626, 7
      %s628 = scalar_select %p627, %s626, 7
      %s629 = smul.addr %s628, 8
      %s630 = scalar_lea.vmem %s7, %s629
      // Predicated region
      $region49: #{tpu_custom_call.1} parent=47 // pred_check
        %p631 = pneg %p188
      $region50: #{tpu_custom_call.1} parent=47 // pred_check_branch
        %633 = sbr.rel (%p631) target = $region52
      $region51: #{tpu_custom_call.1} parent=47 // pred_region
        %s634 = smul.u32 4, %s18
      $region52: #{tpu_custom_call.1} parent=47 // pred_fallthru
        _
    $region48: #{tpu_custom_call.1} parent=5 // pred_fallthru
      _
    %p635 = scmp.le.s32.totalorder 2, %s13
    // Predicated region
    $region53: #{tpu_custom_call.1} parent=5 // pred_check
      %p636 = pneg %p635
    $region54: #{tpu_custom_call.1} parent=5 // pred_check_branch
      %638 = sbr.rel (%p636) target = $region56
    $region55: #{tpu_custom_call.1} parent=5 // pred_region
      %s639 = ssub.s32 %s13, 2
      // Predicated region
      $region57: #{tpu_custom_call.1} parent=55 // pred_check
        %p640 = pneg %p194
      $region58: #{tpu_custom_call.1} parent=55 // pred_check_branch
        %642 = sbr.rel (%p640) target = $region60
      $region59: #{tpu_custom_call.1} parent=55 // pred_region
        %s643 = smul.u32 4, %s19
        %p644 = scmp.lt.s32.totalorder %s643, 7
        %s645 = scalar_select %p644, %s643, 7
        %s646 = smul.addr %s645, 8
        %s647 = scalar_lea.vmem %s7, %s646
      $region60: #{tpu_custom_call.1} parent=55 // pred_fallthru
        _
    $region56: #{tpu_custom_call.1} parent=5 // pred_fallthru
      _
  $region6: #{tpu_custom_call.1} parent=0 // loop_footer
    %s17 = sadd.s32 1, %s13
  $region7: #{tpu_custom_call.1} parent=0 // loop_footer_branch
    %12 = sbr.rel target = $region3
  $region8: #{tpu_custom_call.1} parent=0 // loop_exit
    _

</llo_original>
